<compile_context>
chip_gen: v6e
topology: v6e:2x2x1
jax: 0.10.0
libtpu: 0.0.40
codegen_flags: <defaults>
</compile_context>

<pallas_src>
import functools

import jax
import jax.numpy as jnp
from jax.experimental import pallas as pl
from jax.experimental.pallas import tpu as pltpu


# ----------------------------------------------------------------------------
# Fused kernel
# ----------------------------------------------------------------------------
def _residual_block_kernel(*refs, has_downsample, bn):
    """Fused ResidualBlock on a (BN, Cin, TL) slab (BN batch rows x one tile).

    x_ref  : (BN, Cin, TL)   input slab (channels on sublanes, L on lanes)
    w1_ref : (Cout, Cin)     conv1 (1x1) weights     b1_ref : (Cout, 1) f32
    w2_ref : (Cout, Cout)    conv2 (1x1) weights     b2_ref : (Cout, 1) f32
    wd_ref : (Cout, Cin)     downsample weights      bd_ref : (Cout, 1) f32 [opt]
    o_ref  : (BN, Cout, TL)  output slab
    """
    if has_downsample:
        x_ref, w1_ref, b1_ref, w2_ref, b2_ref, wd_ref, bd_ref, o_ref = refs
    else:
        x_ref, w1_ref, b1_ref, w2_ref, b2_ref, o_ref = refs

    w1 = w1_ref[...]
    b1 = b1_ref[...]
    w2 = w2_ref[...]
    b2 = b2_ref[...]
    if has_downsample:
        wd = wd_ref[...]
        bd = bd_ref[...]

    # Static unroll over the batch sub-block: each iteration is an independent
    # (Cout, Cin) x (Cin, TL) matmul chain with plain 2-D operands (clean MXU
    # shape) and stores its tile immediately, keeping live ranges one tile wide.
    for i in range(bn):
        x = x_ref[i]                               # (Cin, TL), native dtype
        # conv1 -> relu1 -> (dropout1: eval-mode identity)
        h = jnp.maximum(
            jnp.dot(w1, x, preferred_element_type=jnp.float32) + b1, 0.0)
        # conv2 -> relu2 -> (dropout2: eval-mode identity)
        y = jnp.maximum(
            jnp.dot(w2, h.astype(x.dtype), preferred_element_type=jnp.float32)
            + b2, 0.0)
        # Residual branch (kept in VMEM/vregs, never written to HBM).
        if has_downsample:
            res = jnp.dot(wd, x, preferred_element_type=jnp.float32) + bd
        else:
            res = x.astype(jnp.float32)            # Cin == Cout here
        o_ref[i] = (y + res).astype(o_ref.dtype)


# ----------------------------------------------------------------------------
# Tiling / VMEM budgeting
# ----------------------------------------------------------------------------
def _vmem_budget_bytes():
    """Generation-aware VMEM budget: ~75% of physical VMEM, capped at 100 MiB
    (-> ~96 MiB on v5e/v6e's 128 MiB, 48 MiB on v7x's 64 MiB).  Conservative
    64 MiB-physical fallback if the query is unavailable."""
    phys = 64 << 20
    try:
        phys = int(pltpu.get_tpu_info().vmem_capacity_bytes)
    except Exception:
        pass
    return int(min(phys * 3 // 4, 100 << 20))


def _choose_blocking(N, Cin, Cout, L, itemsize, tile_budget_bytes):
    """Pick (BN, TL).  TL grows until the double-buffered in+out footprint hits
    the budget (full L when it fits), preferring 128-aligned divisors of L so
    the last tile is lane-dense (no masked partial store).  BN (a divisor of N)
    batches several rows per step for small-C / short-L shapes, while keeping
    the grid at >= 2 steps when possible so v7x's two TensorCores stay busy."""
    per_col = 2 * itemsize * (Cin + Cout)   # dbl-buffered in+out bytes / position

    # Sequence tile.
    if L <= 256 or L * per_col <= tile_budget_bytes:
        TL = L
    else:
        max_tl = min((tile_budget_bytes // per_col) // 128 * 128,
                     (L // 128) * 128)
        max_tl = max(128, int(max_tl))
        TL = max_tl
        for cand in range(max_tl, 127, -128):       # prefer exact divisors of L
            if L % cand == 0:
                TL = cand
                break

    # Batch sub-block: amortize per-step overhead (target >= ~2 MiB per step).
    target = 2 << 20
    divisors = [d for d in range(1, N + 1) if N % d == 0]
    BN = 1
    for d in divisors:
        if d * TL * per_col > tile_budget_bytes:
            break
        BN = d
        if d * TL * per_col >= target:
            break

    # Don't collapse the whole problem into a single grid step if there was
    # batch parallelism to shard across cores.
    if pl.cdiv(L, TL) == 1 and BN == N and N > 1:
        BN = max(d for d in divisors if d < N)

    return BN, TL


def residual_block_pallas(x, w1, b1, w2, b2, wd=None, bd=None, *,
                          tile_l=None, block_n=None):
    """Fused ResidualBlock forward (kernel_size == 1 convolutions).

    x  : (N, Cin, L)  PyTorch NCL layout (no transpose needed).
    w1 : (Cout, Cin)  b1 : (Cout,)
    w2 : (Cout, Cout) b2 : (Cout,)
    wd : (Cout, Cin) or None (identity residual)   bd : (Cout,) or None
    """
    N, Cin, L = x.shape
    Cout = w1.shape[0]
    has_down = wd is not None
    if not has_down and Cin != Cout:
        raise ValueError("identity residual requires Cin == Cout; pass wd/bd")

    itemsize = jnp.dtype(x.dtype).itemsize
    vmem_budget = _vmem_budget_bytes()

    # Parameters are small; estimate with default double-buffering.
    param_bytes = (2 * itemsize * (Cout * Cin + Cout * Cout
                                   + (Cout * Cin if has_down else 0))
                   + 2 * 4 * 3 * Cout)
    tile_budget = max(4 << 20, vmem_budget - param_bytes - (8 << 20))

    BN, TL = _choose_blocking(N, Cin, Cout, L, itemsize, tile_budget)
    if tile_l is not None:
        TL = int(tile_l)
    if block_n is not None:
        BN = int(block_n)
    if N % BN != 0:
        raise ValueError(f"block_n={BN} must divide N={N}")

    grid = (N // BN, pl.cdiv(L, TL))

    # Weights in the activation dtype (MXU-native); biases stay f32 (they add
    # into the f32 accumulator).
    b1c = b1.reshape(Cout, 1).astype(jnp.float32)
    b2c = b2.reshape(Cout, 1).astype(jnp.float32)

    in_specs = [
        # Per-(batch-block, L-tile) input slab.
        pl.BlockSpec((BN, Cin, TL), lambda n, t: (n, 0, t)),
        # Parameters: constant index_map -> fetched once, resident across steps.
        pl.BlockSpec((Cout, Cin), lambda n, t: (0, 0)),
        pl.BlockSpec((Cout, 1), lambda n, t: (0, 0)),
        pl.BlockSpec((Cout, Cout), lambda n, t: (0, 0)),
        pl.BlockSpec((Cout, 1), lambda n, t: (0, 0)),
    ]
    args = [x, w1.astype(x.dtype), b1c, w2.astype(x.dtype), b2c]
    if has_down:
        in_specs += [
            pl.BlockSpec((Cout, Cin), lambda n, t: (0, 0)),
            pl.BlockSpec((Cout, 1), lambda n, t: (0, 0)),
        ]
        args += [wd.astype(x.dtype), bd.reshape(Cout, 1).astype(jnp.float32)]

    # Explicit VMEM limit: double-buffered in/out slabs + params + headroom,
    # never below the common 32 MiB scoped default (v5e's default is 16 MiB),
    # never above the generation-aware budget.
    step_bytes = 2 * itemsize * BN * TL * (Cin + Cout)
    vmem_limit = int(min(max(step_bytes + param_bytes + (8 << 20), 32 << 20),
                         vmem_budget))

    kernel = functools.partial(_residual_block_kernel,
                               has_downsample=has_down, bn=BN)

    return pl.pallas_call(
        kernel,
        out_shape=jax.ShapeDtypeStruct((N, Cout, L), x.dtype),
        grid=grid,
        in_specs=in_specs,
        out_specs=pl.BlockSpec((BN, Cout, TL), lambda n, t: (n, 0, t)),
        compiler_params=pltpu.CompilerParams(
            dimension_semantics=("parallel", "parallel"),
            vmem_limit_bytes=vmem_limit),
    )(*args)


# ----------------------------------------------------------------------------
# Module wrapper (mirrors the PyTorch ResidualBlock, eval mode)
# ----------------------------------------------------------------------------
class ResidualBlockPallas:
    def __init__(self, in_channels, out_channels, kernel_size, dilation,
                 dropout, key, tile_l=None, block_n=None):
        del dropout                       # eval-mode identity
        self.kernel_size = kernel_size
        self.dilation = dilation
        self.tile_l = tile_l
        self.block_n = block_n
        k1, k2, k3 = jax.random.split(key, 3)

        def conv_init(key, cin, cout, ksz):
            # PyTorch Conv1d default init: U(-b, b), b = 1/sqrt(cin*ksz).
            kw, kb = jax.random.split(key)
            bound = 1.0 / (cin * ksz) ** 0.5
            w = jax.random.uniform(kw, (cout, cin, ksz), jnp.float32, -bound, bound)
            b = jax.random.uniform(kb, (cout,), jnp.float32, -bound, bound)
            return w, b

        self.w1, self.b1 = conv_init(k1, in_channels, out_channels, kernel_size)
        self.w2, self.b2 = conv_init(k2, out_channels, out_channels, kernel_size)
        if in_channels != out_channels:
            self.w_down, self.b_down = conv_init(k3, in_channels, out_channels, 1)
        else:
            self.w_down, self.b_down = None, None

    def __call__(self, x_ncl):
        pad = (self.kernel_size - 1) * self.dilation
        if pad != 0:
            # The reference forward is shape-invalid here too (x + res length
            # mismatch), so raising matches PyTorch behaviour.
            raise NotImplementedError(
                "ResidualBlock forward is only shape-valid for kernel_size == 1")
        w1 = self.w1[:, :, 0]
        w2 = self.w2[:, :, 0]
        wd = None if self.w_down is None else self.w_down[:, :, 0]
        bd = None if self.w_down is None else self.b_down
        return residual_block_pallas(x_ncl, w1, self.b1, w2, self.b2, wd, bd,
                                     tile_l=self.tile_l, block_n=self.block_n)


# ----------------------------------------------------------------------------
# Pure-JAX reference (reproduces the PyTorch forward for kernel_size == 1)
# ----------------------------------------------------------------------------
def _reference_forward(block, x_ncl):
    def pointwise(x, w, b):                      # w: (Cout, Cin), x: (N, Cin, L)
        return jnp.einsum("oc,ncl->nol", w, x) + b[None, :, None]

    w1 = block.w1[:, :, 0]
    w2 = block.w2[:, :, 0]
    res = (x_ncl if block.w_down is None
           else pointwise(x_ncl, block.w_down[:, :, 0], block.b_down))
    h = jnp.maximum(pointwise(x_ncl, w1, block.b1), 0.0)
    h = jnp.maximum(pointwise(h, w2, block.b2), 0.0)
    return h + res


if __name__ == "__main__":
    key = jax.random.PRNGKey(0)
    k1, k2, k3, k4, kx1, kx2, kx3, kx4 = jax.random.split(key, 8)

    def check(block, x, atol=2e-3, rtol=2e-3):
        y = jax.block_until_ready(jax.jit(block.__call__)(x))
        y_ref = _reference_forward(block, x)
        assert y.shape == y_ref.shape, (y.shape, y_ref.shape)
        assert jnp.allclose(y, y_ref, atol=atol, rtol=rtol), "mismatch vs reference"
        return y

    # 1) Canonical shape-valid config: channel change -> downsample path,
    #    single full-L tile (full dims satisfy the (8,128) rule).
    block = ResidualBlockPallas(4, 8, kernel_size=1, dilation=1, dropout=0.1, key=k1)
    x = jax.random.normal(kx1, (2, 4, 16), jnp.float32)
    check(block, x)

    # 2) Identity residual, longer L: auto-chosen blocking (TL == L, one batch
    #    element per step so both grid steps can shard across cores).
    block2 = ResidualBlockPallas(32, 32, kernel_size=1, dilation=1, dropout=0.1, key=k2)
    x2 = jax.random.normal(kx2, (2, 32, 512), jnp.float32)
    check(block2, x2)

    # 3) Batch-blocked path: small channels / short L -> several batch rows per
    #    grid step (exercises the static BN unroll in the kernel).
    block3 = ResidualBlockPallas(8, 8, kernel_size=1, dilation=1, dropout=0.1, key=k3)
    x3 = jax.random.normal(kx3, (8, 8, 128), jnp.float32)
    check(block3, x3)

    # 4) Ragged last L-tile (L % tile_l != 0) with downsample: exercises the
    #    masked partial-store path for correctness.
    block4 = ResidualBlockPallas(16, 24, kernel_size=1, dilation=1, dropout=0.1,
                                 key=k4, tile_l=128)
    x4 = jax.random.normal(kx4, (2, 16, 320), jnp.float32)
    check(block4, x4)

    print("KERNEL_OK")
</pallas_src>

<mosaic_0001>
module attributes {stable_mosaic.version = 11 : i64} {
  func.func @_residual_block_kernel(%arg0: i32, %arg1: i32, %arg2: memref<1x4x16xf32, #tpu.memory_space<vmem>>, %arg3: memref<8x4xf32, #tpu.memory_space<vmem>>, %arg4: memref<8x1xf32, #tpu.memory_space<vmem>>, %arg5: memref<8x8xf32, #tpu.memory_space<vmem>>, %arg6: memref<8x1xf32, #tpu.memory_space<vmem>>, %arg7: memref<8x4xf32, #tpu.memory_space<vmem>>, %arg8: memref<8x1xf32, #tpu.memory_space<vmem>>, %arg9: memref<1x8x16xf32, #tpu.memory_space<vmem>>) attributes {dimension_semantics = [#tpu.dimension_semantics<parallel>, #tpu.dimension_semantics<parallel>], iteration_bounds = array<i64: 2, 1>, scalar_prefetch = 0 : i64, scratch_operands = 0 : i64, tpu.core_type = #tpu.core_type<tc>, window_params = [{transform_indices = @transform_0, window_bounds = array<i64: 1, 4, 16>}, {pipeline_mode = #tpu.pipeline_mode<synchronous>, transform_indices = @transform_1, window_bounds = array<i64: 8, 4>}, {pipeline_mode = #tpu.pipeline_mode<synchronous>, transform_indices = @transform_2, window_bounds = array<i64: 8, 1>}, {pipeline_mode = #tpu.pipeline_mode<synchronous>, transform_indices = @transform_3, window_bounds = array<i64: 8, 8>}, {pipeline_mode = #tpu.pipeline_mode<synchronous>, transform_indices = @transform_4, window_bounds = array<i64: 8, 1>}, {pipeline_mode = #tpu.pipeline_mode<synchronous>, transform_indices = @transform_5, window_bounds = array<i64: 8, 4>}, {pipeline_mode = #tpu.pipeline_mode<synchronous>, transform_indices = @transform_6, window_bounds = array<i64: 8, 1>}, {transform_indices = @transform_7, window_bounds = array<i64: 1, 8, 16>}]} {
    %c0 = arith.constant 0 : index
    %c0_0 = arith.constant 0 : index
    %0 = vector.load %arg3[%c0, %c0_0] : memref<8x4xf32, #tpu.memory_space<vmem>>, vector<8x4xf32>
    %c0_1 = arith.constant 0 : index
    %c0_2 = arith.constant 0 : index
    %1 = vector.load %arg4[%c0_1, %c0_2] : memref<8x1xf32, #tpu.memory_space<vmem>>, vector<8x1xf32>
    %c0_3 = arith.constant 0 : index
    %c0_4 = arith.constant 0 : index
    %2 = vector.load %arg5[%c0_3, %c0_4] : memref<8x8xf32, #tpu.memory_space<vmem>>, vector<8x8xf32>
    %c0_5 = arith.constant 0 : index
    %c0_6 = arith.constant 0 : index
    %3 = vector.load %arg6[%c0_5, %c0_6] : memref<8x1xf32, #tpu.memory_space<vmem>>, vector<8x1xf32>
    %c0_7 = arith.constant 0 : index
    %c0_8 = arith.constant 0 : index
    %4 = vector.load %arg7[%c0_7, %c0_8] : memref<8x4xf32, #tpu.memory_space<vmem>>, vector<8x4xf32>
    %c0_9 = arith.constant 0 : index
    %c0_10 = arith.constant 0 : index
    %5 = vector.load %arg8[%c0_9, %c0_10] : memref<8x1xf32, #tpu.memory_space<vmem>>, vector<8x1xf32>
    %c0_11 = arith.constant 0 : index
    %c0_12 = arith.constant 0 : index
    %c0_13 = arith.constant 0 : index
    %6 = vector.load %arg2[%c0_11, %c0_12, %c0_13] : memref<1x4x16xf32, #tpu.memory_space<vmem>>, vector<1x4x16xf32>
    %7 = vector.shape_cast %6 : vector<1x4x16xf32> to vector<4x16xf32>
    %cst = arith.constant dense<0.000000e+00> : vector<8x16xf32>
    %8 = tpu.matmul %0, %7, %cst {dimension_numbers = #tpu.dot_dimension_numbers<[1], [0], [0], [1], [0, 0, 1, 1], [], []>} : vector<8x4xf32>, vector<4x16xf32>, vector<8x16xf32> -> vector<8x16xf32>
    %9 = vector.broadcast %1 : vector<8x1xf32> to vector<8x16xf32>
    %10 = arith.addf %8, %9 : vector<8x16xf32>
    %cst_14 = arith.constant 0.000000e+00 : f32
    %11 = vector.broadcast %cst_14 : f32 to vector<8x16xf32>
    %12 = arith.maximumf %10, %11 : vector<8x16xf32>
    %cst_15 = arith.constant dense<0.000000e+00> : vector<8x16xf32>
    %13 = tpu.matmul %2, %12, %cst_15 {dimension_numbers = #tpu.dot_dimension_numbers<[1], [0], [0], [1], [0, 0, 1, 1], [], []>} : vector<8x8xf32>, vector<8x16xf32>, vector<8x16xf32> -> vector<8x16xf32>
    %14 = vector.broadcast %3 : vector<8x1xf32> to vector<8x16xf32>
    %15 = arith.addf %13, %14 : vector<8x16xf32>
    %cst_16 = arith.constant 0.000000e+00 : f32
    %16 = vector.broadcast %cst_16 : f32 to vector<8x16xf32>
    %17 = arith.maximumf %15, %16 : vector<8x16xf32>
    %cst_17 = arith.constant dense<0.000000e+00> : vector<8x16xf32>
    %18 = tpu.matmul %4, %7, %cst_17 {dimension_numbers = #tpu.dot_dimension_numbers<[1], [0], [0], [1], [0, 0, 1, 1], [], []>} : vector<8x4xf32>, vector<4x16xf32>, vector<8x16xf32> -> vector<8x16xf32>
    %19 = vector.broadcast %5 : vector<8x1xf32> to vector<8x16xf32>
    %20 = arith.addf %18, %19 : vector<8x16xf32>
    %21 = arith.addf %17, %20 : vector<8x16xf32>
    %c0_18 = arith.constant 0 : index
    %c0_19 = arith.constant 0 : index
    %c0_20 = arith.constant 0 : index
    %22 = vector.load %arg9[%c0_18, %c0_19, %c0_20] : memref<1x8x16xf32, #tpu.memory_space<vmem>>, vector<1x8x16xf32>
    %23 = vector.shape_cast %22 : vector<1x8x16xf32> to vector<8x16xf32>
    %24 = vector.shape_cast %21 : vector<8x16xf32> to vector<1x8x16xf32>
    tpu.vector_store %arg9[%c0_18, %c0_19, %c0_20], %24 {strides = array<i32>} : memref<1x8x16xf32, #tpu.memory_space<vmem>>, vector<1x8x16xf32>,
    return
  }
  func.func @transform_0(%arg0: i32, %arg1: i32) -> (i32, i32, i32) {
    %c0_i32 = arith.constant 0 : i32
    %c0_i32_0 = arith.constant 0 : i32
    return %arg0, %c0_i32, %arg1 : i32, i32, i32
  }
  func.func @transform_1(%arg0: i32, %arg1: i32) -> (i32, i32) {
    %c0_i32 = arith.constant 0 : i32
    %c0_i32_0 = arith.constant 0 : i32
    %c0_i32_1 = arith.constant 0 : i32
    return %c0_i32, %c0_i32_0 : i32, i32
  }
  func.func @transform_2(%arg0: i32, %arg1: i32) -> (i32, i32) {
    %c0_i32 = arith.constant 0 : i32
    %c0_i32_0 = arith.constant 0 : i32
    %c0_i32_1 = arith.constant 0 : i32
    return %c0_i32, %c0_i32_0 : i32, i32
  }
  func.func @transform_3(%arg0: i32, %arg1: i32) -> (i32, i32) {
    %c0_i32 = arith.constant 0 : i32
    %c0_i32_0 = arith.constant 0 : i32
    %c0_i32_1 = arith.constant 0 : i32
    return %c0_i32, %c0_i32_0 : i32, i32
  }
  func.func @transform_4(%arg0: i32, %arg1: i32) -> (i32, i32) {
    %c0_i32 = arith.constant 0 : i32
    %c0_i32_0 = arith.constant 0 : i32
    %c0_i32_1 = arith.constant 0 : i32
    return %c0_i32, %c0_i32_0 : i32, i32
  }
  func.func @transform_5(%arg0: i32, %arg1: i32) -> (i32, i32) {
    %c0_i32 = arith.constant 0 : i32
    %c0_i32_0 = arith.constant 0 : i32
    %c0_i32_1 = arith.constant 0 : i32
    return %c0_i32, %c0_i32_0 : i32, i32
  }
  func.func @transform_6(%arg0: i32, %arg1: i32) -> (i32, i32) {
    %c0_i32 = arith.constant 0 : i32
    %c0_i32_0 = arith.constant 0 : i32
    %c0_i32_1 = arith.constant 0 : i32
    return %c0_i32, %c0_i32_0 : i32, i32
  }
  func.func @transform_7(%arg0: i32, %arg1: i32) -> (i32, i32, i32) {
    %c0_i32 = arith.constant 0 : i32
    %c0_i32_0 = arith.constant 0 : i32
    return %arg0, %c0_i32, %arg1 : i32, i32, i32
  }
}

</mosaic_0001>

<llo_original>
// kernel: a_call__.1
$region0: #{a_call__.1}
  #allocation0 [shape = 'u32[]', space=smem, size = 0x4, offset = 0x4, fixed_abs, tag = 'smem constant byte address 0x4 - core index']
  #allocation1 [shape = 'u32[144,128]{1,0:T(1,128)}', space=vmem, size = 0x12000, scoped, tag = 'internal scratch']
  %s0 = inlined_call_operand.hbm [shape: f32[2,4,16], index: 0, kind: input, shape index: {}]
  %s1 = inlined_call_operand.hbm [shape: f32[8,4], index: 1, kind: input, shape index: {}]
  %s2 = inlined_call_operand.hbm [shape: f32[8,1], index: 2, kind: input, shape index: {}]
  %s3 = inlined_call_operand.hbm [shape: f32[8,8], index: 3, kind: input, shape index: {}]
  %s4 = inlined_call_operand.hbm [shape: f32[8,1], index: 4, kind: input, shape index: {}]
  %s5 = inlined_call_operand.hbm [shape: f32[8,4], index: 5, kind: input, shape index: {}]
  %s6 = inlined_call_operand.vmem [shape: f32[8,1], index: 6, kind: input, shape index: {}]
  %s7 = inlined_call_operand.hbm [shape: f32[2,8,16], index: 7, kind: output, shape index: {}]
  %s8 = sld [smem:[#allocation0]]
  $region85: #{a_call__.1} parent=0
    _
  %s10 = ssub.s32 1, %s8
  %s11 = scalar_select 0, %s10, %s8
  $region1: #{a_call__.1} parent=0
    #allocation2 [shape = 'u8[4096]{0}', space=vmem, size = 0x1000, scoped, tag = 'input window, operand 0']
    #allocation3 [shape = 's32[2]{0}', space=sflag, size = 0x8, scoped, tag = 'scoped memory for a_call__.1']
    #allocation4 [shape = 's32[2]{0}', space=sflag, size = 0x8, scoped, tag = 'scoped memory for a_call__.1']
    #allocation5 [shape = 'u8[4096]{0}', space=vmem, size = 0x1000, scoped, tag = 'input window, operand 1, single buffered']
    #allocation6 [shape = 's32[1]{0}', space=sflag, size = 0x4, scoped, tag = 'scoped memory for a_call__.1']
    #allocation7 [shape = 'u8[4096]{0}', space=vmem, size = 0x1000, scoped, tag = 'input window, operand 2, single buffered']
    #allocation8 [shape = 'u8[4096]{0}', space=vmem, size = 0x1000, scoped, tag = 'input window, operand 3, single buffered']
    #allocation9 [shape = 's32[1]{0}', space=sflag, size = 0x4, scoped, tag = 'scoped memory for a_call__.1']
    #allocation10 [shape = 'u8[4096]{0}', space=vmem, size = 0x1000, scoped, tag = 'input window, operand 4, single buffered']
    #allocation11 [shape = 'u8[4096]{0}', space=vmem, size = 0x1000, scoped, tag = 'input window, operand 5, single buffered']
    #allocation12 [shape = 's32[1]{0}', space=sflag, size = 0x4, scoped, tag = 'scoped memory for a_call__.1']
    #allocation13 [shape = 'u8[8192]{0}', space=vmem, size = 0x2000, scoped, tag = 'output window, operand 0']
    %12 = vsyncpa [#allocation3], 0
    %s13 = scalar_lea.sflag [#allocation3], 1
    %14 = vsyncpa %s13, 0
    %15 = vsyncpa [#allocation6], 0
    %16 = vsyncpa [#allocation9], 0
    %17 = vsyncpa [#allocation12], 0
    %18 = vsyncpa [#allocation4], 0
    %s19 = scalar_lea.sflag [#allocation4], 1
    %20 = vsyncpa %s19, 0
    loop: start=0, step=1, limit=4
    $region2: #{a_call__.1} parent=1 // loop_pre_header
      _
    $region3: #{a_call__.1} parent=1 // loop_header
      %s22 = sphi 0, %s26
      %p23 = scmp.ge.s32.totalorder %s22, 4
      %s29 = sphi 0, %s41
      %s30 = sphi 0, %s37
      %s31 = sphi 0, %s29
      %s32 = sphi 0, %s30
      %s33 = sphi 0, %s31
      %s34 = sphi 0, %s32
      %s46 = sphi 0, %s48
      %s49 = sphi 0, %s46
      %s50 = sphi 0, %s49
      %s66 = sphi 0, %s50
      %s70 = sphi 0, %s70
      %s72 = sphi 0, %s70
      %s73 = sphi 0, %s72
      %s87 = sphi 0, %s73
      %s91 = sphi 0, %s91
      %s93 = sphi 0, %s91
      %s94 = sphi 0, %s93
      %s108 = sphi 0, %s94
      %s112 = sphi 0, %s112
      %s114 = sphi 0, %s112
      %s115 = sphi 0, %s114
      %s129 = sphi 0, %s115
      %s133 = sphi 0, %s133
      %s135 = sphi 0, %s133
      %s136 = sphi 0, %s135
      %s150 = sphi 0, %s136
      %s154 = sphi 0, %s154
      %s156 = sphi 0, %s154
      %s157 = sphi 0, %s156
      %s171 = sphi 0, %s157
      %s175 = sphi 0, %s175
      %s177 = sphi 0, %s175
      %s178 = sphi 0, %s177
      %s192 = sphi 0, %s178
      %s200 = sphi 0, %s202
      %s203 = sphi 0, %s200
      %s204 = sphi 0, %s203
      %s220 = sphi 0, %s204
    $region4: #{a_call__.1} parent=1 // loop_header_branch
      %25 = sbr.rel (%p23) target = $region8
    $region5: #{a_call__.1} parent=1 // loop_body
      %s27 = ssub.s32 %s22, 1
      %s28 = ssub.s32 %s22, 2
      %s35 = sadd.s32 1, %s30
      %p36 = scmp.ge.s32.totalorder %s35, 1
      %s37 = scalar_select %p36, 0, %s35
      %s38 = sadd.s32 1, %s29
      %s39 = scalar_select %p36, %s38, %s29
      %p40 = scmp.ge.s32.totalorder %s39, 2
      %s41 = scalar_select %p40, 0, %s39
      %s42 = ssub.s32 %s29, %s41
      %s43 = ssub.s32 %s30, %s37
      %s44 = sor.u32 %s42, %s43
      %p45 = scmp.eq.s32.totalorder %s44, 0
      %s47 = sadd.s32 %s46, 1
      %s48 = scalar_select %p45, %s46, %s47
      %p51 = pneg %p45
      %p52 = scmp.eq.s32.totalorder %s22, 1
      %p53 = por %p51, %p52
      %p54 = scmp.ne.s32.totalorder %s46, %s49
      %p55 = scmp.eq.s32.totalorder %s22, 0
      %p56 = por %p54, %p55
      %p57 = scmp.ne.s32.totalorder %s46, %s49
      %p58 = scmp.eq.s32.totalorder %s27, 1
      %p59 = por %p57, %p58
      %p60 = scmp.ne.s32.totalorder %s49, %s50
      %p61 = scmp.eq.s32.totalorder %s27, 0
      %p62 = por %p60, %p61
      %p63 = scmp.ne.s32.totalorder %s49, %s50
      %p64 = scmp.eq.s32.totalorder %s28, 1
      %p65 = por %p63, %p64
      %p67 = scmp.ne.s32.totalorder %s50, %s66
      %p68 = scmp.eq.s32.totalorder %s28, 0
      %p69 = por %p67, %p68
      %s71 = sadd.s32 %s70, 1
      %p74 = scmp.eq.s32.totalorder %s22, 1
      %p75 = scmp.ne.s32.totalorder %s70, %s72
      %p76 = scmp.eq.s32.totalorder %s22, 0
      %p77 = por %p75, %p76
      %p78 = scmp.ne.s32.totalorder %s70, %s72
      %p79 = scmp.eq.s32.totalorder %s27, 1
      %p80 = por %p78, %p79
      %p81 = scmp.ne.s32.totalorder %s72, %s73
      %p82 = scmp.eq.s32.totalorder %s27, 0
      %p83 = por %p81, %p82
      %p84 = scmp.ne.s32.totalorder %s72, %s73
      %p85 = scmp.eq.s32.totalorder %s28, 1
      %p86 = por %p84, %p85
      %p88 = scmp.ne.s32.totalorder %s73, %s87
      %p89 = scmp.eq.s32.totalorder %s28, 0
      %p90 = por %p88, %p89
      %s92 = sadd.s32 %s91, 1
      %p95 = scmp.eq.s32.totalorder %s22, 1
      %p96 = scmp.ne.s32.totalorder %s91, %s93
      %p97 = scmp.eq.s32.totalorder %s22, 0
      %p98 = por %p96, %p97
      %p99 = scmp.ne.s32.totalorder %s91, %s93
      %p100 = scmp.eq.s32.totalorder %s27, 1
      %p101 = por %p99, %p100
      %p102 = scmp.ne.s32.totalorder %s93, %s94
      %p103 = scmp.eq.s32.totalorder %s27, 0
      %p104 = por %p102, %p103
      %p105 = scmp.ne.s32.totalorder %s93, %s94
      %p106 = scmp.eq.s32.totalorder %s28, 1
      %p107 = por %p105, %p106
      %p109 = scmp.ne.s32.totalorder %s94, %s108
      %p110 = scmp.eq.s32.totalorder %s28, 0
      %p111 = por %p109, %p110
      %s113 = sadd.s32 %s112, 1
      %p116 = scmp.eq.s32.totalorder %s22, 1
      %p117 = scmp.ne.s32.totalorder %s112, %s114
      %p118 = scmp.eq.s32.totalorder %s22, 0
      %p119 = por %p117, %p118
      %p120 = scmp.ne.s32.totalorder %s112, %s114
      %p121 = scmp.eq.s32.totalorder %s27, 1
      %p122 = por %p120, %p121
      %p123 = scmp.ne.s32.totalorder %s114, %s115
      %p124 = scmp.eq.s32.totalorder %s27, 0
      %p125 = por %p123, %p124
      %p126 = scmp.ne.s32.totalorder %s114, %s115
      %p127 = scmp.eq.s32.totalorder %s28, 1
      %p128 = por %p126, %p127
      %p130 = scmp.ne.s32.totalorder %s115, %s129
      %p131 = scmp.eq.s32.totalorder %s28, 0
      %p132 = por %p130, %p131
      %s134 = sadd.s32 %s133, 1
      %p137 = scmp.eq.s32.totalorder %s22, 1
      %p138 = scmp.ne.s32.totalorder %s133, %s135
      %p139 = scmp.eq.s32.totalorder %s22, 0
      %p140 = por %p138, %p139
      %p141 = scmp.ne.s32.totalorder %s133, %s135
      %p142 = scmp.eq.s32.totalorder %s27, 1
      %p143 = por %p141, %p142
      %p144 = scmp.ne.s32.totalorder %s135, %s136
      %p145 = scmp.eq.s32.totalorder %s27, 0
      %p146 = por %p144, %p145
      %p147 = scmp.ne.s32.totalorder %s135, %s136
      %p148 = scmp.eq.s32.totalorder %s28, 1
      %p149 = por %p147, %p148
      %p151 = scmp.ne.s32.totalorder %s136, %s150
      %p152 = scmp.eq.s32.totalorder %s28, 0
      %p153 = por %p151, %p152
      %s155 = sadd.s32 %s154, 1
      %p158 = scmp.eq.s32.totalorder %s22, 1
      %p159 = scmp.ne.s32.totalorder %s154, %s156
      %p160 = scmp.eq.s32.totalorder %s22, 0
      %p161 = por %p159, %p160
      %p162 = scmp.ne.s32.totalorder %s154, %s156
      %p163 = scmp.eq.s32.totalorder %s27, 1
      %p164 = por %p162, %p163
      %p165 = scmp.ne.s32.totalorder %s156, %s157
      %p166 = scmp.eq.s32.totalorder %s27, 0
      %p167 = por %p165, %p166
      %p168 = scmp.ne.s32.totalorder %s156, %s157
      %p169 = scmp.eq.s32.totalorder %s28, 1
      %p170 = por %p168, %p169
      %p172 = scmp.ne.s32.totalorder %s157, %s171
      %p173 = scmp.eq.s32.totalorder %s28, 0
      %p174 = por %p172, %p173
      %s176 = sadd.s32 %s175, 1
      %p179 = scmp.eq.s32.totalorder %s22, 1
      %p180 = scmp.ne.s32.totalorder %s175, %s177
      %p181 = scmp.eq.s32.totalorder %s22, 0
      %p182 = por %p180, %p181
      %p183 = scmp.ne.s32.totalorder %s175, %s177
      %p184 = scmp.eq.s32.totalorder %s27, 1
      %p185 = por %p183, %p184
      %p186 = scmp.ne.s32.totalorder %s177, %s178
      %p187 = scmp.eq.s32.totalorder %s27, 0
      %p188 = por %p186, %p187
      %p189 = scmp.ne.s32.totalorder %s177, %s178
      %p190 = scmp.eq.s32.totalorder %s28, 1
      %p191 = por %p189, %p190
      %p193 = scmp.ne.s32.totalorder %s178, %s192
      %p194 = scmp.eq.s32.totalorder %s28, 0
      %p195 = por %p193, %p194
      %s196 = ssub.s32 %s29, %s41
      %s197 = ssub.s32 %s30, %s37
      %s198 = sor.u32 %s196, %s197
      %p199 = scmp.eq.s32.totalorder %s198, 0
      %s201 = sadd.s32 %s200, 1
      %s202 = scalar_select %p199, %s200, %s201
      %p205 = pneg %p199
      %p206 = scmp.eq.s32.totalorder %s22, 1
      %p207 = por %p205, %p206
      %p208 = scmp.ne.s32.totalorder %s200, %s203
      %p209 = scmp.eq.s32.totalorder %s22, 0
      %p210 = por %p208, %p209
      %p211 = scmp.ne.s32.totalorder %s200, %s203
      %p212 = scmp.eq.s32.totalorder %s27, 1
      %p213 = por %p211, %p212
      %p214 = scmp.ne.s32.totalorder %s203, %s204
      %p215 = scmp.eq.s32.totalorder %s27, 0
      %p216 = por %p214, %p215
      %p217 = scmp.ne.s32.totalorder %s203, %s204
      %p218 = scmp.eq.s32.totalorder %s28, 1
      %p219 = por %p217, %p218
      %p221 = scmp.ne.s32.totalorder %s204, %s220
      %p222 = scmp.eq.s32.totalorder %s28, 0
      %p223 = por %p221, %p222
      %p224 = scmp.le.s32.totalorder 1, %s22
      %p225 = scmp.lt.s32.totalorder %s22, 3
      %p226 = pnand %p224, %p225
      %p227 = pneg %p226
      // Predicated region
      $region9: #{a_call__.1} parent=5 // pred_check
        _
      $region10: #{a_call__.1} parent=5 // pred_check_branch
        %229 = sbr.rel (%p226) target = $region12
      $region11: #{a_call__.1} parent=5 // pred_region
        %s230 = ssub.s32 %s22, 1
        // Predicated region
        $region13: #{a_call__.1} parent=11 // pred_check
          %p231 = pneg %p83
        $region14: #{a_call__.1} parent=11 // pred_check_branch
          %233 = sbr.rel (%p231) target = $region16
        $region15: #{a_call__.1} parent=11 // pred_region
          %s235 = ssub.s32 128, 128
          %236 = vsyncadd [#allocation6], %s235
          %s238 = sshll.u32 [#allocation5], 4
          %s239 = int_to_ptr.vmem [resolvable:$true] %s238
          %241 = dma.hbm_to_vmem [thread:$0]  %s1, 128, %s239, [#allocation6]
        $region16: #{a_call__.1} parent=11 // pred_fallthru
          _
        // Predicated region
        $region17: #{a_call__.1} parent=11 // pred_check
          %p242 = pneg %p104
        $region18: #{a_call__.1} parent=11 // pred_check_branch
          %244 = sbr.rel (%p242) target = $region20
        $region19: #{a_call__.1} parent=11 // pred_region
          %s246 = ssub.s32 128, 128
          %247 = vsyncadd [#allocation6], %s246
          %s249 = sshll.u32 [#allocation7], 4
          %s250 = int_to_ptr.vmem [resolvable:$true] %s249
          %252 = dma.hbm_to_vmem [thread:$0]  %s2, 128, %s250, [#allocation6]
        $region20: #{a_call__.1} parent=11 // pred_fallthru
          _
        // Predicated region
        $region21: #{a_call__.1} parent=11 // pred_check
          %p253 = pneg %p125
        $region22: #{a_call__.1} parent=11 // pred_check_branch
          %255 = sbr.rel (%p253) target = $region24
        $region23: #{a_call__.1} parent=11 // pred_region
          %s257 = ssub.s32 128, 128
          %258 = vsyncadd [#allocation9], %s257
          %s260 = sshll.u32 [#allocation8], 4
          %s261 = int_to_ptr.vmem [resolvable:$true] %s260
          %263 = dma.hbm_to_vmem [thread:$0]  %s3, 128, %s261, [#allocation9]
        $region24: #{a_call__.1} parent=11 // pred_fallthru
          _
        // Predicated region
        $region25: #{a_call__.1} parent=11 // pred_check
          %p264 = pneg %p146
        $region26: #{a_call__.1} parent=11 // pred_check_branch
          %266 = sbr.rel (%p264) target = $region28
        $region27: #{a_call__.1} parent=11 // pred_region
          %s268 = ssub.s32 128, 128
          %269 = vsyncadd [#allocation9], %s268
          %s271 = sshll.u32 [#allocation10], 4
          %s272 = int_to_ptr.vmem [resolvable:$true] %s271
          %274 = dma.hbm_to_vmem [thread:$0]  %s4, 128, %s272, [#allocation9]
        $region28: #{a_call__.1} parent=11 // pred_fallthru
          _
        // Predicated region
        $region29: #{a_call__.1} parent=11 // pred_check
          %p275 = pneg %p167
        $region30: #{a_call__.1} parent=11 // pred_check_branch
          %277 = sbr.rel (%p275) target = $region32
        $region31: #{a_call__.1} parent=11 // pred_region
          %s279 = ssub.s32 128, 128
          %280 = vsyncadd [#allocation12], %s279
          %s282 = sshll.u32 [#allocation11], 4
          %s283 = int_to_ptr.vmem [resolvable:$true] %s282
          %285 = dma.hbm_to_vmem [thread:$0]  %s5, 128, %s283, [#allocation12]
        $region32: #{a_call__.1} parent=11 // pred_fallthru
          _
        // Predicated region
        $region33: #{a_call__.1} parent=11 // pred_check
          %p286 = pneg %p188
        $region34: #{a_call__.1} parent=11 // pred_check_branch
          %288 = sbr.rel (%p286) target = $region36
        $region35: #{a_call__.1} parent=11 // pred_region
          _
        $region36: #{a_call__.1} parent=11 // pred_fallthru
          _
      $region12: #{a_call__.1} parent=5 // pred_fallthru
        _
      %p289 = scmp.lt.s32.totalorder %s22, 2
      // Predicated region
      $region37: #{a_call__.1} parent=5 // pred_check
        %p290 = pneg %p289
      $region38: #{a_call__.1} parent=5 // pred_check_branch
        %292 = sbr.rel (%p290) target = $region40
      $region39: #{a_call__.1} parent=5 // pred_region
        // Predicated region
        $region41: #{a_call__.1} parent=39 // pred_check
          %p293 = pneg %p56
        $region42: #{a_call__.1} parent=39 // pred_check_branch
          %295 = sbr.rel (%p293) target = $region44
        $region43: #{a_call__.1} parent=39 // pred_region
          %s296 = sand.u32 %s46, 1
          %s297 = scalar_lea.sflag [#allocation3], %s296
          %s298 = sand.u32 %s46, 1
          %s299 = smul.addr %s298, 4
          %s300 = scalar_lea.vmem [#allocation2], %s299
          %s302 = ssub.s32 64, 64
          %303 = vsyncadd %s297, %s302
          %s304 = sadd.s32 %s30, %s29
          %s305 = smul.addr %s304, 64
          %s306 = scalar_lea.hbm %s0, %s305
          %s308 = sshll.u32 %s300, 4
          %s309 = int_to_ptr.vmem [resolvable:$true] %s308
          %311 = dma.hbm_to_vmem [thread:$0]  %s306, 64, %s309, %s297
        $region44: #{a_call__.1} parent=39 // pred_fallthru
          _
      $region40: #{a_call__.1} parent=5 // pred_fallthru
        _
      %p312 = scmp.le.s32.totalorder 1, %s22
      %p313 = scmp.lt.s32.totalorder %s22, 3
      %p314 = pnand %p312, %p313
      %p315 = pneg %p314
      // Predicated region
      $region45: #{a_call__.1} parent=5 // pred_check
        _
      $region46: #{a_call__.1} parent=5 // pred_check_branch
        %317 = sbr.rel (%p314) target = $region48
      $region47: #{a_call__.1} parent=5 // pred_region
        %s318 = ssub.s32 %s22, 1
        %s319 = sand.u32 %s49, 1
        %s320 = scalar_lea.sflag [#allocation3], %s319
        %s321 = sand.u32 %s49, 1
        %s322 = smul.addr %s321, 4
        %s323 = scalar_lea.vmem [#allocation2], %s322
        // Predicated region
        $region49: #{a_call__.1} parent=47 // pred_check
          %p324 = pneg %p62
        $region50: #{a_call__.1} parent=47 // pred_check_branch
          %326 = sbr.rel (%p324) target = $region52
        $region51: #{a_call__.1} parent=47 // pred_region
          %327 = dma.done %s320, 64
        $region52: #{a_call__.1} parent=47 // pred_fallthru
          _
        // Predicated region
        $region53: #{a_call__.1} parent=47 // pred_check
          %p328 = pneg %p83
        $region54: #{a_call__.1} parent=47 // pred_check_branch
          %330 = sbr.rel (%p328) target = $region56
        $region55: #{a_call__.1} parent=47 // pred_region
          %331 = dma.done [#allocation6], 128
        $region56: #{a_call__.1} parent=47 // pred_fallthru
          _
        // Predicated region
        $region57: #{a_call__.1} parent=47 // pred_check
          %p332 = pneg %p104
        $region58: #{a_call__.1} parent=47 // pred_check_branch
          %334 = sbr.rel (%p332) target = $region60
        $region59: #{a_call__.1} parent=47 // pred_region
          %335 = dma.done [#allocation6], 128
        $region60: #{a_call__.1} parent=47 // pred_fallthru
          _
        // Predicated region
        $region61: #{a_call__.1} parent=47 // pred_check
          %p336 = pneg %p125
        $region62: #{a_call__.1} parent=47 // pred_check_branch
          %338 = sbr.rel (%p336) target = $region64
        $region63: #{a_call__.1} parent=47 // pred_region
          %339 = dma.done [#allocation9], 128
        $region64: #{a_call__.1} parent=47 // pred_fallthru
          _
        // Predicated region
        $region65: #{a_call__.1} parent=47 // pred_check
          %p340 = pneg %p146
        $region66: #{a_call__.1} parent=47 // pred_check_branch
          %342 = sbr.rel (%p340) target = $region68
        $region67: #{a_call__.1} parent=47 // pred_region
          %343 = dma.done [#allocation9], 128
        $region68: #{a_call__.1} parent=47 // pred_fallthru
          _
        // Predicated region
        $region69: #{a_call__.1} parent=47 // pred_check
          %p344 = pneg %p167
        $region70: #{a_call__.1} parent=47 // pred_check_branch
          %346 = sbr.rel (%p344) target = $region72
        $region71: #{a_call__.1} parent=47 // pred_region
          %347 = dma.done [#allocation12], 128
        $region72: #{a_call__.1} parent=47 // pred_fallthru
          _
        %s348 = sand.u32 %s49, 1
        %s349 = scalar_lea.sflag [#allocation3], %s348
        %s350 = sand.u32 %s49, 1
        %s351 = smul.addr %s350, 4
        %s352 = scalar_lea.vmem [#allocation2], %s351
        %p353 = pneg %p62
        %p354 = pneg %p59
        %p355 = pneg %p83
        %p356 = pneg %p80
        %p357 = pneg %p104
        %p358 = pneg %p101
        %p359 = pneg %p125
        %p360 = pneg %p122
        %p361 = pneg %p146
        %p362 = pneg %p143
        %p363 = pneg %p167
        %p364 = pneg %p164
        %p365 = pneg %p188
        %p366 = pneg %p185
        %p367 = pneg %p216
        %p368 = pneg %p213
        %s369 = sand.u32 %s203, 1
        %s370 = scalar_lea.sflag [#allocation4], %s369
        %s371 = sand.u32 %s203, 1
        %s372 = smul.addr %s371, 8
        %s373 = scalar_lea.vmem [#allocation13], %s372
        %v374 = vld [vmem:[#allocation5] sm:$0xff]
        %v375 = vld [vmem:[#allocation7] sm:$0xff]
        %v376 = vld [vmem:[#allocation8] sm:$0xff]
        %v377 = vld [vmem:[#allocation10] sm:$0xff]
        %v378 = vld [vmem:[#allocation11] sm:$0xff]
        %v379 = vld [vmem:[%s6] sm:$0xff]
        %v380 = vld [vmem:[%s323] sm:$0xf]
        %382 = vset.pattern.permute.xlu0 0
        %383 = vperm.xlu0 %382, %v375
        %v384 = vpop.permute.xlu0 %383
        %vm386 = vcmask 31744
        %v388 = vsel %vm386, %v374, 0
        %vm390 = vcmask 1043456
        %v392 = vsel %vm390, %v380, 0
        %394 = vmatprep.subr.mxu0 0.0
        %395 = vmatpush1.msra.mxu0 0.0
        %396 = vmatprep.subr.mxu0 0.0
        %397 = vmatpush1.msra.mxu0 0.0
        %398 = vmatprep.subr.mxu0 0.0
        %399 = vmatpush1.msra.mxu0 0.0
        %400 = vmatprep.subr.mxu0 0.0
        %401 = vmatpush1.msra.mxu0 0.0
        %402 = vmatprep.subr.mxu0 0.0
        %403 = vmatpush1.msra.mxu0 0.0
        %404 = vmatprep.subr.mxu0 0.0
        %405 = vmatpush1.msra.mxu0 0.0
        %406 = vmatprep.subr.mxu0 0.0
        %407 = vmatpush1.msra.mxu0 0.0
        %408 = vmatprep.subr.mxu0 0.0
        %409 = vmatpush1.msra.mxu0 0.0
        %410 = vmatprep.subr.mxu0 0.0
        %411 = vmatpush1.msra.mxu0 0.0
        %412 = vmatprep.subr.mxu0 0.0
        %413 = vmatpush1.msra.mxu0 0.0
        %414 = vmatprep.subr.mxu0 0.0
        %415 = vmatpush1.msra.mxu0 0.0
        %416 = vmatprep.subr.mxu0 0.0
        %417 = vmatpush1.msra.mxu0 0.0
        %418 = vmatprep.subr.mxu0 0.0
        %419 = vmatpush1.msra.mxu0 0.0
        %420 = vmatprep.subr.mxu0 0.0
        %421 = vmatpush1.msra.mxu0 0.0
        %422 = vmatprep.subr.mxu0 0.0
        %423 = vmatpush1.msra.mxu0 0.0
        %424 = vmatprep.subr.mxu0 0.0
        %425 = vmatpush1.msra.mxu0 %v392
        %426 = vmatprep.subr.mxu0 0.0
        %427 = vmatpush2.msra.mxu0 0.0
        %428 = vmatprep.subr.mxu0 0.0
        %429 = vmatpush2.msra.mxu0 0.0
        %430 = vmatprep.subr.mxu0 0.0
        %431 = vmatpush2.msra.mxu0 0.0
        %432 = vmatprep.subr.mxu0 0.0
        %433 = vmatpush2.msra.mxu0 0.0
        %434 = vmatprep.subr.mxu0 0.0
        %435 = vmatpush2.msra.mxu0 0.0
        %436 = vmatprep.subr.mxu0 0.0
        %437 = vmatpush2.msra.mxu0 0.0
        %438 = vmatprep.subr.mxu0 0.0
        %439 = vmatpush2.msra.mxu0 0.0
        %440 = vmatprep.subr.mxu0 0.0
        %441 = vmatpush2.msra.mxu0 0.0
        %442 = vmatprep.subr.mxu0 0.0
        %443 = vmatpush2.msra.mxu0 0.0
        %444 = vmatprep.subr.mxu0 0.0
        %445 = vmatpush2.msra.mxu0 0.0
        %446 = vmatprep.subr.mxu0 0.0
        %447 = vmatpush2.msra.mxu0 0.0
        %448 = vmatprep.subr.mxu0 0.0
        %449 = vmatpush2.msra.mxu0 0.0
        %450 = vmatprep.subr.mxu0 0.0
        %451 = vmatpush2.msra.mxu0 0.0
        %452 = vmatprep.subr.mxu0 0.0
        %453 = vmatpush2.msra.mxu0 0.0
        %454 = vmatprep.subr.mxu0 0.0
        %455 = vmatpush2.msra.mxu0 0.0
        %456 = vmatprep.subr.mxu0 0.0
        %457 = vmatpush2.msra.mxu0 0.0
        %458 = vmatprep.mubr.f32.mxu0 0.0
        %459 = vmatmul.mubr.f32.gmra.mxu0 %v388
        %v460 = vpop.f32.mrf.mxu0
        %v461 = vadd.f32 %v384, %v460
        %v462 = vpop.f32.mrf.mxu0
        %463 = vdwg.mxu0
        %v464 = vmax.f32 %v461, 0.0
        %466 = vset.pattern.permute.xlu0 0
        %467 = vperm.xlu0 %466, %v377
        %v468 = vpop.permute.xlu0 %467
        %vm470 = vcmask 64512
        %v472 = vsel %vm470, %v376, 0
        %474 = vmatprep.subr.mxu0 0.0
        %475 = vmatpush1.msra.mxu0 0.0
        %476 = vmatprep.subr.mxu0 0.0
        %477 = vmatpush1.msra.mxu0 0.0
        %478 = vmatprep.subr.mxu0 0.0
        %479 = vmatpush1.msra.mxu0 0.0
        %480 = vmatprep.subr.mxu0 0.0
        %481 = vmatpush1.msra.mxu0 0.0
        %482 = vmatprep.subr.mxu0 0.0
        %483 = vmatpush1.msra.mxu0 0.0
        %484 = vmatprep.subr.mxu0 0.0
        %485 = vmatpush1.msra.mxu0 0.0
        %486 = vmatprep.subr.mxu0 0.0
        %487 = vmatpush1.msra.mxu0 0.0
        %488 = vmatprep.subr.mxu0 0.0
        %489 = vmatpush1.msra.mxu0 0.0
        %490 = vmatprep.subr.mxu0 0.0
        %491 = vmatpush1.msra.mxu0 0.0
        %492 = vmatprep.subr.mxu0 0.0
        %493 = vmatpush1.msra.mxu0 0.0
        %494 = vmatprep.subr.mxu0 0.0
        %495 = vmatpush1.msra.mxu0 0.0
        %496 = vmatprep.subr.mxu0 0.0
        %497 = vmatpush1.msra.mxu0 0.0
        %498 = vmatprep.subr.mxu0 0.0
        %499 = vmatpush1.msra.mxu0 0.0
        %500 = vmatprep.subr.mxu0 0.0
        %501 = vmatpush1.msra.mxu0 0.0
        %502 = vmatprep.subr.mxu0 0.0
        %503 = vmatpush1.msra.mxu0 0.0
        %504 = vmatprep.subr.mxu0 0.0
        %505 = vmatpush1.msra.mxu0 %v464
        %506 = vmatprep.subr.mxu0 0.0
        %507 = vmatpush2.msra.mxu0 0.0
        %508 = vmatprep.subr.mxu0 0.0
        %509 = vmatpush2.msra.mxu0 0.0
        %510 = vmatprep.subr.mxu0 0.0
        %511 = vmatpush2.msra.mxu0 0.0
        %512 = vmatprep.subr.mxu0 0.0
        %513 = vmatpush2.msra.mxu0 0.0
        %514 = vmatprep.subr.mxu0 0.0
        %515 = vmatpush2.msra.mxu0 0.0
        %516 = vmatprep.subr.mxu0 0.0
        %517 = vmatpush2.msra.mxu0 0.0
        %518 = vmatprep.subr.mxu0 0.0
        %519 = vmatpush2.msra.mxu0 0.0
        %520 = vmatprep.subr.mxu0 0.0
        %521 = vmatpush2.msra.mxu0 0.0
        %522 = vmatprep.subr.mxu0 0.0
        %523 = vmatpush2.msra.mxu0 0.0
        %524 = vmatprep.subr.mxu0 0.0
        %525 = vmatpush2.msra.mxu0 0.0
        %526 = vmatprep.subr.mxu0 0.0
        %527 = vmatpush2.msra.mxu0 0.0
        %528 = vmatprep.subr.mxu0 0.0
        %529 = vmatpush2.msra.mxu0 0.0
        %530 = vmatprep.subr.mxu0 0.0
        %531 = vmatpush2.msra.mxu0 0.0
        %532 = vmatprep.subr.mxu0 0.0
        %533 = vmatpush2.msra.mxu0 0.0
        %534 = vmatprep.subr.mxu0 0.0
        %535 = vmatpush2.msra.mxu0 0.0
        %536 = vmatprep.subr.mxu0 0.0
        %537 = vmatpush2.msra.mxu0 0.0
        %538 = vmatprep.mubr.f32.mxu0 0.0
        %539 = vmatmul.mubr.f32.gmra.mxu0 %v472
        %v540 = vpop.f32.mrf.mxu0
        %v541 = vadd.f32 %v468, %v540
        %v542 = vpop.f32.mrf.mxu0
        %543 = vdwg.mxu0
        %v544 = vmax.f32 %v541, 0.0
        %546 = vset.pattern.permute.xlu0 0
        %547 = vperm.xlu0 %546, %v379
        %v548 = vpop.permute.xlu0 %547
        %v551 = vsel %vm386, %v378, 0
        %553 = vmatprep.subr.mxu0 0.0
        %554 = vmatpush1.msra.mxu0 0.0
        %555 = vmatprep.subr.mxu0 0.0
        %556 = vmatpush1.msra.mxu0 0.0
        %557 = vmatprep.subr.mxu0 0.0
        %558 = vmatpush1.msra.mxu0 0.0
        %559 = vmatprep.subr.mxu0 0.0
        %560 = vmatpush1.msra.mxu0 0.0
        %561 = vmatprep.subr.mxu0 0.0
        %562 = vmatpush1.msra.mxu0 0.0
        %563 = vmatprep.subr.mxu0 0.0
        %564 = vmatpush1.msra.mxu0 0.0
        %565 = vmatprep.subr.mxu0 0.0
        %566 = vmatpush1.msra.mxu0 0.0
        %567 = vmatprep.subr.mxu0 0.0
        %568 = vmatpush1.msra.mxu0 0.0
        %569 = vmatprep.subr.mxu0 0.0
        %570 = vmatpush1.msra.mxu0 0.0
        %571 = vmatprep.subr.mxu0 0.0
        %572 = vmatpush1.msra.mxu0 0.0
        %573 = vmatprep.subr.mxu0 0.0
        %574 = vmatpush1.msra.mxu0 0.0
        %575 = vmatprep.subr.mxu0 0.0
        %576 = vmatpush1.msra.mxu0 0.0
        %577 = vmatprep.subr.mxu0 0.0
        %578 = vmatpush1.msra.mxu0 0.0
        %579 = vmatprep.subr.mxu0 0.0
        %580 = vmatpush1.msra.mxu0 0.0
        %581 = vmatprep.subr.mxu0 0.0
        %582 = vmatpush1.msra.mxu0 0.0
        %583 = vmatprep.subr.mxu0 0.0
        %584 = vmatpush1.msra.mxu0 %v392
        %585 = vmatprep.subr.mxu0 0.0
        %586 = vmatpush2.msra.mxu0 0.0
        %587 = vmatprep.subr.mxu0 0.0
        %588 = vmatpush2.msra.mxu0 0.0
        %589 = vmatprep.subr.mxu0 0.0
        %590 = vmatpush2.msra.mxu0 0.0
        %591 = vmatprep.subr.mxu0 0.0
        %592 = vmatpush2.msra.mxu0 0.0
        %593 = vmatprep.subr.mxu0 0.0
        %594 = vmatpush2.msra.mxu0 0.0
        %595 = vmatprep.subr.mxu0 0.0
        %596 = vmatpush2.msra.mxu0 0.0
        %597 = vmatprep.subr.mxu0 0.0
        %598 = vmatpush2.msra.mxu0 0.0
        %599 = vmatprep.subr.mxu0 0.0
        %600 = vmatpush2.msra.mxu0 0.0
        %601 = vmatprep.subr.mxu0 0.0
        %602 = vmatpush2.msra.mxu0 0.0
        %603 = vmatprep.subr.mxu0 0.0
        %604 = vmatpush2.msra.mxu0 0.0
        %605 = vmatprep.subr.mxu0 0.0
        %606 = vmatpush2.msra.mxu0 0.0
        %607 = vmatprep.subr.mxu0 0.0
        %608 = vmatpush2.msra.mxu0 0.0
        %609 = vmatprep.subr.mxu0 0.0
        %610 = vmatpush2.msra.mxu0 0.0
        %611 = vmatprep.subr.mxu0 0.0
        %612 = vmatpush2.msra.mxu0 0.0
        %613 = vmatprep.subr.mxu0 0.0
        %614 = vmatpush2.msra.mxu0 0.0
        %615 = vmatprep.subr.mxu0 0.0
        %616 = vmatpush2.msra.mxu0 0.0
        %617 = vmatprep.mubr.f32.mxu0 0.0
        %618 = vmatmul.mubr.f32.gmra.mxu0 %v551
        %v619 = vpop.f32.mrf.mxu0
        %v620 = vadd.f32 %v548, %v619
        %v621 = vpop.f32.mrf.mxu0
        %622 = vdwg.mxu0
        %v623 = vadd.f32 %v544, %v620
        %vm624 = vcmask 130048
        %625 = vst.msk [vmem:[%s373] sm:$0xff] %vm624, %v623
        %s626 = sand.u32 %s203, 1
        %s627 = scalar_lea.sflag [#allocation4], %s626
        %s628 = sand.u32 %s203, 1
        %s629 = smul.addr %s628, 8
        %s630 = scalar_lea.vmem [#allocation13], %s629
        // Predicated region
        $region73: #{a_call__.1} parent=47 // pred_check
          %p631 = pneg %p213
        $region74: #{a_call__.1} parent=47 // pred_check_branch
          %633 = sbr.rel (%p631) target = $region76
        $region75: #{a_call__.1} parent=47 // pred_region
          %s635 = ssub.s32 128, 128
          %636 = vsyncadd %s627, %s635
          %s637 = sadd.s32 %s32, %s31
          %s638 = smul.addr %s637, 128
          %s639 = scalar_lea.hbm %s7, %s638
          %s641 = sshll.u32 %s630, 4
          %s642 = int_to_ptr.vmem [resolvable:$true] %s641
          %644 = dma.vmem_to_hbm [thread:$0]  %s642, 128, %s639, %s627
        $region76: #{a_call__.1} parent=47 // pred_fallthru
          _
      $region48: #{a_call__.1} parent=5 // pred_fallthru
        _
      %p645 = scmp.le.s32.totalorder 2, %s22
      // Predicated region
      $region77: #{a_call__.1} parent=5 // pred_check
        %p646 = pneg %p645
      $region78: #{a_call__.1} parent=5 // pred_check_branch
        %648 = sbr.rel (%p646) target = $region80
      $region79: #{a_call__.1} parent=5 // pred_region
        %s649 = ssub.s32 %s22, 2
        // Predicated region
        $region81: #{a_call__.1} parent=79 // pred_check
          %p650 = pneg %p219
        $region82: #{a_call__.1} parent=79 // pred_check_branch
          %652 = sbr.rel (%p650) target = $region84
        $region83: #{a_call__.1} parent=79 // pred_region
          %s653 = sand.u32 %s204, 1
          %s654 = scalar_lea.sflag [#allocation4], %s653
          %s655 = sand.u32 %s204, 1
          %s656 = smul.addr %s655, 8
          %s657 = scalar_lea.vmem [#allocation13], %s656
          %658 = dma.done %s654, 128
        $region84: #{a_call__.1} parent=79 // pred_fallthru
          _
      $region80: #{a_call__.1} parent=5 // pred_fallthru
        _
    $region6: #{a_call__.1} parent=1 // loop_footer
      %s26 = sadd.s32 1, %s22
    $region7: #{a_call__.1} parent=1 // loop_footer_branch
      %21 = sbr.rel target = $region3
    $region8: #{a_call__.1} parent=1 // loop_exit
      _
    %659 = vsyncpa [#allocation3], 1
    %s660 = scalar_lea.sflag [#allocation3], 1
    %661 = vsyncpa %s660, 1
    %662 = vsyncpa [#allocation6], 1
    %663 = vsyncpa [#allocation9], 1
    %664 = vsyncpa [#allocation12], 1
    %665 = vsyncpa [#allocation4], 1
    %s666 = scalar_lea.sflag [#allocation4], 1
    %667 = vsyncpa %s666, 1

</llo_original>
